<compile_context>
chip_gen: v5e
topology: v5e:2x2
jax: 0.10.0
libtpu: 0.0.40
codegen_flags: <defaults>
</compile_context>

<pallas_src>
import jax
import jax.numpy as jnp
from jax.experimental import pallas as pl
from jax.experimental.pallas import tpu as pltpu

LANES = 128            # TPU lane width
MAX_TOKENS_PER_TILE = 8192   # 256 sublane rows x 32 tokens/row at D=4


def _round_up(x, m):
    return ((x + m - 1) // m) * m


def _embedding_kernel(idx_ref, table_ref, out_ref):
    # idx_ref:   (rows_tile, 128) int32   -- each token index replicated D times
    #                                        along its group of lanes
    # table_ref: (V, 128)         float32 -- row r = table[r, :] tiled 32x along lanes
    # out_ref:   (rows_tile, 128) float32 -- packed (32 tokens x 4 dims) per row
    v = table_ref.shape[0]
    idx = idx_ref[...]
    acc = jnp.zeros(out_ref.shape, jnp.float32)
    # V = 10: fully unrolled VPU compare/select.  No MXU, no per-row lane
    # broadcast (table already lane-tiled in the wrapper); the (1,128) operand
    # only replicates across sublanes, which is cheap.
    for row in range(v):
        row_vals = table_ref[row:row + 1, :]          # (1, 128) static slice
        acc = jnp.where(idx == row, row_vals, acc)
    out_ref[...] = acc


def _choose_tiling(n, toks_per_row):
    """Pick (n_pad, tok_tile): tok_tile tokens per grid step, n_pad % tok_tile == 0."""
    granule = 8 * toks_per_row                     # 8 sublane rows -> 256 tokens at D=4
    n_pad = max(granule, _round_up(n, granule))
    tok_tile = min(MAX_TOKENS_PER_TILE, n_pad)
    # v7x megacore: prefer >= 2 grid steps when there is enough work so the
    # "parallel" grid axis actually uses both TensorCores.
    if n_pad // tok_tile < 2 and n_pad >= 2 * granule:
        tok_tile = max(granule, ((n_pad // 2) // granule) * granule)
    n_pad = _round_up(n_pad, tok_tile)
    return n_pad, tok_tile


def embedding_forward_pallas(x, table):
    """Pallas gather: equivalent to torch.nn.Embedding(V, D)(x), out-of-range -> 0."""
    orig_shape = x.shape
    v, d = table.shape
    assert LANES % d == 0, "embedding_dim must divide 128 for the packed layout"
    toks_per_row = LANES // d                      # 32 tokens per 128-lane row

    idx_flat = x.reshape(-1).astype(jnp.int32)     # TODO(synk): nn.Embedding raises on OOB indices
    n = idx_flat.shape[0]
    n_pad, tok_tile = _choose_tiling(n, toks_per_row)

    idx_padded = jnp.pad(idx_flat, (0, n_pad - n))                   # no scatter
    # Replicate each index across its D output lanes; pack 32 tokens per row.
    idx_tiled = jnp.repeat(idx_padded, d).reshape(n_pad // toks_per_row, LANES)
    # Pre-tile the table along lanes once (hoists the lane broadcast out of the kernel).
    table_tiled = jnp.tile(table.astype(jnp.float32), (1, toks_per_row))  # (V, 128)

    rows_total = n_pad // toks_per_row
    rows_tile = tok_tile // toks_per_row           # multiple of 8
    grid = (n_pad // tok_tile,)

    out_packed = pl.pallas_call(
        _embedding_kernel,
        out_shape=jax.ShapeDtypeStruct((rows_total, LANES), jnp.float32),
        grid=grid,
        in_specs=[
            pl.BlockSpec((rows_tile, LANES), lambda i: (i, 0)),   # indices
            pl.BlockSpec((v, LANES), lambda i: (0, 0)),           # tiny table, every step
        ],
        out_specs=pl.BlockSpec((rows_tile, LANES), lambda i: (i, 0)),
        compiler_params=pltpu.CompilerParams(
            dimension_semantics=("parallel",)),
    )(idx_tiled, table_tiled)

    # Free contiguous reshape: row r holds tokens [r*32, r*32+32), D-contiguous.
    out = out_packed.reshape(n_pad, d)[:n]
    return out.reshape(*orig_shape, d).astype(table.dtype)


def embedding_forward(x, table, *, min_kernel_tokens=1024):
    """Dispatch: plain XLA gather for tiny inputs, Pallas kernel otherwise."""
    if x.size < min_kernel_tokens:
        return jnp.take(table, x.astype(jnp.int32), axis=0)
    return embedding_forward_pallas(x, table)


if __name__ == "__main__":
    key = jax.random.PRNGKey(0)
    k_idx, k_tab = jax.random.split(key)

    # Deterministic parameter init (nn.Embedding default: N(0, 1)).
    V, D = 10, 4
    table = jax.random.normal(k_tab, (V, D), dtype=jnp.float32)

    # Small input consistent with the module: batch=2, seq=8 integer indices.
    x = jax.random.randint(k_idx, (2, 8), 0, V, dtype=jnp.int32)

    # Exercise the Pallas kernel path explicitly (the dispatcher would route
    # this toy size to jnp.take).
    y = embedding_forward_pallas(x, table)
    jax.block_until_ready(y)

    ref = jnp.take(table, x, axis=0)
    assert y.shape == (2, 8, D)
    assert jnp.allclose(y, ref, atol=1e-6), "mismatch vs reference gather (pallas path)"

    # Dispatcher sanity check (small-N fast path).
    y2 = embedding_forward(x, table)
    jax.block_until_ready(y2)
    assert jnp.allclose(y2, ref, atol=1e-6), "mismatch vs reference gather (dispatch path)"

    print("KERNEL_OK")
</pallas_src>

<mosaic_0001>
module attributes {stable_mosaic.version = 11 : i64} {
  func.func @_embedding_kernel(%arg0: i32, %arg1: memref<8x128xi32, #tpu.memory_space<vmem>>, %arg2: memref<10x128xf32, #tpu.memory_space<vmem>>, %arg3: memref<8x128xf32, #tpu.memory_space<vmem>>) attributes {dimension_semantics = [#tpu.dimension_semantics<parallel>], iteration_bounds = array<i64: 1>, scalar_prefetch = 0 : i64, scratch_operands = 0 : i64, tpu.core_type = #tpu.core_type<tc>, window_params = [{transform_indices = @transform_0, window_bounds = array<i64: 8, 128>}, {pipeline_mode = #tpu.pipeline_mode<synchronous>, transform_indices = @transform_1, window_bounds = array<i64: 10, 128>}, {transform_indices = @transform_2, window_bounds = array<i64: 8, 128>}]} {
    %c0 = arith.constant 0 : index
    %c0_0 = arith.constant 0 : index
    %0 = vector.load %arg1[%c0, %c0_0] : memref<8x128xi32, #tpu.memory_space<vmem>>, vector<8x128xi32>
    %cst = arith.constant 0.000000e+00 : f32
    %1 = vector.broadcast %cst : f32 to vector<8x128xf32>
    %c0_1 = arith.constant 0 : index
    %c0_2 = arith.constant 0 : index
    %2 = vector.load %arg2[%c0_1, %c0_2] : memref<10x128xf32, #tpu.memory_space<vmem>>, vector<1x128xf32>
    %c0_i32 = arith.constant 0 : i32
    %3 = vector.broadcast %c0_i32 : i32 to vector<8x128xi32>
    %4 = arith.cmpi eq, %0, %3 : vector<8x128xi32>
    %5 = vector.shape_cast %2 : vector<1x128xf32> to vector<1x128xf32>
    %6 = vector.broadcast %5 : vector<1x128xf32> to vector<8x128xf32>
    %7 = arith.select %4, %6, %1 : vector<8x128xi1>, vector<8x128xf32>
    %c1 = arith.constant 1 : index
    %c0_3 = arith.constant 0 : index
    %8 = vector.load %arg2[%c1, %c0_3] : memref<10x128xf32, #tpu.memory_space<vmem>>, vector<1x128xf32>
    %c1_i32 = arith.constant 1 : i32
    %9 = vector.broadcast %c1_i32 : i32 to vector<8x128xi32>
    %10 = arith.cmpi eq, %0, %9 : vector<8x128xi32>
    %11 = vector.shape_cast %8 : vector<1x128xf32> to vector<1x128xf32>
    %12 = vector.broadcast %11 : vector<1x128xf32> to vector<8x128xf32>
    %13 = arith.select %10, %12, %7 : vector<8x128xi1>, vector<8x128xf32>
    %c2 = arith.constant 2 : index
    %c0_4 = arith.constant 0 : index
    %14 = vector.load %arg2[%c2, %c0_4] : memref<10x128xf32, #tpu.memory_space<vmem>>, vector<1x128xf32>
    %c2_i32 = arith.constant 2 : i32
    %15 = vector.broadcast %c2_i32 : i32 to vector<8x128xi32>
    %16 = arith.cmpi eq, %0, %15 : vector<8x128xi32>
    %17 = vector.shape_cast %14 : vector<1x128xf32> to vector<1x128xf32>
    %18 = vector.broadcast %17 : vector<1x128xf32> to vector<8x128xf32>
    %19 = arith.select %16, %18, %13 : vector<8x128xi1>, vector<8x128xf32>
    %c3 = arith.constant 3 : index
    %c0_5 = arith.constant 0 : index
    %20 = vector.load %arg2[%c3, %c0_5] : memref<10x128xf32, #tpu.memory_space<vmem>>, vector<1x128xf32>
    %c3_i32 = arith.constant 3 : i32
    %21 = vector.broadcast %c3_i32 : i32 to vector<8x128xi32>
    %22 = arith.cmpi eq, %0, %21 : vector<8x128xi32>
    %23 = vector.shape_cast %20 : vector<1x128xf32> to vector<1x128xf32>
    %24 = vector.broadcast %23 : vector<1x128xf32> to vector<8x128xf32>
    %25 = arith.select %22, %24, %19 : vector<8x128xi1>, vector<8x128xf32>
    %c4 = arith.constant 4 : index
    %c0_6 = arith.constant 0 : index
    %26 = vector.load %arg2[%c4, %c0_6] : memref<10x128xf32, #tpu.memory_space<vmem>>, vector<1x128xf32>
    %c4_i32 = arith.constant 4 : i32
    %27 = vector.broadcast %c4_i32 : i32 to vector<8x128xi32>
    %28 = arith.cmpi eq, %0, %27 : vector<8x128xi32>
    %29 = vector.shape_cast %26 : vector<1x128xf32> to vector<1x128xf32>
    %30 = vector.broadcast %29 : vector<1x128xf32> to vector<8x128xf32>
    %31 = arith.select %28, %30, %25 : vector<8x128xi1>, vector<8x128xf32>
    %c5 = arith.constant 5 : index
    %c0_7 = arith.constant 0 : index
    %32 = vector.load %arg2[%c5, %c0_7] : memref<10x128xf32, #tpu.memory_space<vmem>>, vector<1x128xf32>
    %c5_i32 = arith.constant 5 : i32
    %33 = vector.broadcast %c5_i32 : i32 to vector<8x128xi32>
    %34 = arith.cmpi eq, %0, %33 : vector<8x128xi32>
    %35 = vector.shape_cast %32 : vector<1x128xf32> to vector<1x128xf32>
    %36 = vector.broadcast %35 : vector<1x128xf32> to vector<8x128xf32>
    %37 = arith.select %34, %36, %31 : vector<8x128xi1>, vector<8x128xf32>
    %c6 = arith.constant 6 : index
    %c0_8 = arith.constant 0 : index
    %38 = vector.load %arg2[%c6, %c0_8] : memref<10x128xf32, #tpu.memory_space<vmem>>, vector<1x128xf32>
    %c6_i32 = arith.constant 6 : i32
    %39 = vector.broadcast %c6_i32 : i32 to vector<8x128xi32>
    %40 = arith.cmpi eq, %0, %39 : vector<8x128xi32>
    %41 = vector.shape_cast %38 : vector<1x128xf32> to vector<1x128xf32>
    %42 = vector.broadcast %41 : vector<1x128xf32> to vector<8x128xf32>
    %43 = arith.select %40, %42, %37 : vector<8x128xi1>, vector<8x128xf32>
    %c7 = arith.constant 7 : index
    %c0_9 = arith.constant 0 : index
    %44 = vector.load %arg2[%c7, %c0_9] : memref<10x128xf32, #tpu.memory_space<vmem>>, vector<1x128xf32>
    %c7_i32 = arith.constant 7 : i32
    %45 = vector.broadcast %c7_i32 : i32 to vector<8x128xi32>
    %46 = arith.cmpi eq, %0, %45 : vector<8x128xi32>
    %47 = vector.shape_cast %44 : vector<1x128xf32> to vector<1x128xf32>
    %48 = vector.broadcast %47 : vector<1x128xf32> to vector<8x128xf32>
    %49 = arith.select %46, %48, %43 : vector<8x128xi1>, vector<8x128xf32>
    %c8 = arith.constant 8 : index
    %c0_10 = arith.constant 0 : index
    %50 = vector.load %arg2[%c8, %c0_10] : memref<10x128xf32, #tpu.memory_space<vmem>>, vector<1x128xf32>
    %c8_i32 = arith.constant 8 : i32
    %51 = vector.broadcast %c8_i32 : i32 to vector<8x128xi32>
    %52 = arith.cmpi eq, %0, %51 : vector<8x128xi32>
    %53 = vector.shape_cast %50 : vector<1x128xf32> to vector<1x128xf32>
    %54 = vector.broadcast %53 : vector<1x128xf32> to vector<8x128xf32>
    %55 = arith.select %52, %54, %49 : vector<8x128xi1>, vector<8x128xf32>
    %c9 = arith.constant 9 : index
    %c0_11 = arith.constant 0 : index
    %56 = vector.load %arg2[%c9, %c0_11] : memref<10x128xf32, #tpu.memory_space<vmem>>, vector<1x128xf32>
    %c9_i32 = arith.constant 9 : i32
    %57 = vector.broadcast %c9_i32 : i32 to vector<8x128xi32>
    %58 = arith.cmpi eq, %0, %57 : vector<8x128xi32>
    %59 = vector.shape_cast %56 : vector<1x128xf32> to vector<1x128xf32>
    %60 = vector.broadcast %59 : vector<1x128xf32> to vector<8x128xf32>
    %61 = arith.select %58, %60, %55 : vector<8x128xi1>, vector<8x128xf32>
    %c0_12 = arith.constant 0 : index
    %c0_13 = arith.constant 0 : index
    %62 = vector.load %arg3[%c0_12, %c0_13] : memref<8x128xf32, #tpu.memory_space<vmem>>, vector<8x128xf32>
    tpu.vector_store %arg3[%c0_12, %c0_13], %61 {strides = array<i32>} : memref<8x128xf32, #tpu.memory_space<vmem>>, vector<8x128xf32>,
    return
  }
  func.func @transform_0(%arg0: i32) -> (i32, i32) {
    %c0_i32 = arith.constant 0 : i32
    %c0_i32_0 = arith.constant 0 : i32
    return %arg0, %c0_i32 : i32, i32
  }
  func.func @transform_1(%arg0: i32) -> (i32, i32) {
    %c0_i32 = arith.constant 0 : i32
    %c0_i32_0 = arith.constant 0 : i32
    %c0_i32_1 = arith.constant 0 : i32
    return %c0_i32, %c0_i32_0 : i32, i32
  }
  func.func @transform_2(%arg0: i32) -> (i32, i32) {
    %c0_i32 = arith.constant 0 : i32
    %c0_i32_0 = arith.constant 0 : i32
    return %arg0, %c0_i32 : i32, i32
  }
}

</mosaic_0001>

<llo_original>
// kernel: tpu_custom_call.1
$region0: #{tpu_custom_call.1}
  #allocation0 [shape = 'u32[]', space=smem, size = 0x4, offset = 0x4, fixed_abs, tag = 'smem constant byte address 0x4 - core index']
  #allocation1 [shape = 'u32[72,128]{1,0:T(1,128)}', space=vmem, size = 0x9000, scoped, tag = 'internal scratch']
  %s0 = inlined_call_operand.hbm [shape: s32[8,128], index: 0, kind: input, shape index: {}]
  %s1 = inlined_call_operand.hbm [shape: f32[10,128], index: 1, kind: input, shape index: {}]
  %s2 = inlined_call_operand.hbm [shape: f32[8,128], index: 2, kind: output, shape index: {}]
  %s3 = sld [smem:[#allocation0]]
  $region26: #{tpu_custom_call.1} parent=0
    _
  %s5 = ssub.s32 1, %s3
  %s6 = scalar_select 0, %s5, %s3
  $region1: #{tpu_custom_call.1} parent=0
    #allocation2 [shape = 'u8[4096]{0}', space=vmem, size = 0x1000, scoped, tag = 'input window, operand 0, single buffered']
    #allocation3 [shape = 's32[1]{0}', space=sflag, size = 0x4, scoped, tag = 'scoped memory for tpu_custom_call.1']
    #allocation4 [shape = 's32[1]{0}', space=sflag, size = 0x4, scoped, tag = 'scoped memory for tpu_custom_call.1']
    #allocation5 [shape = 'u8[8192]{0}', space=vmem, size = 0x2000, scoped, tag = 'input window, operand 1, single buffered']
    #allocation6 [shape = 's32[1]{0}', space=sflag, size = 0x4, scoped, tag = 'scoped memory for tpu_custom_call.1']
    #allocation7 [shape = 'u8[4096]{0}', space=vmem, size = 0x1000, scoped, tag = 'output window, operand 0, single buffered']
    %7 = vsyncpa [#allocation3], 0
    %8 = vsyncpa [#allocation6], 0
    %9 = vsyncpa [#allocation4], 0
    // Predicated region
    $region2: #{tpu_custom_call.1} parent=1 // pred_check
      _
    $region3: #{tpu_custom_call.1} parent=1 // pred_check_branch
      %11 = sbr.rel (0) target = $region5
    $region4: #{tpu_custom_call.1} parent=1 // pred_region
      %13 = vsyncadd [#allocation3], 0
      %s15 = sshll.u32 %s0, 4
      %s16 = int_to_ptr.hbm [resolvable:$true] %s15
      %s17 = sshll.u32 [#allocation2], 4
      %s18 = int_to_ptr.vmem [resolvable:$true] %s17
      %20 = dma.hbm_to_vmem [thread:$0]  %s16, 128, %s18, [#allocation3]
    $region5: #{tpu_custom_call.1} parent=1 // pred_fallthru
      _
    // Predicated region
    $region6: #{tpu_custom_call.1} parent=1 // pred_check
      _
    $region7: #{tpu_custom_call.1} parent=1 // pred_check_branch
      %22 = sbr.rel (0) target = $region9
    $region8: #{tpu_custom_call.1} parent=1 // pred_region
      %24 = vsyncadd [#allocation6], 0
      %s25 = sshll.u32 %s1, 4
      %s26 = int_to_ptr.hbm [resolvable:$true] %s25
      %s27 = sshll.u32 [#allocation5], 4
      %s28 = int_to_ptr.vmem [resolvable:$true] %s27
      %33 = dma.hbm_to_vmem [thread:$0]  %s26, 256, %s28, [#allocation6], 128, 128, 8
    $region9: #{tpu_custom_call.1} parent=1 // pred_fallthru
      _
    // Predicated region
    $region10: #{tpu_custom_call.1} parent=1 // pred_check
      _
    $region11: #{tpu_custom_call.1} parent=1 // pred_check_branch
      %35 = sbr.rel (0) target = $region13
    $region12: #{tpu_custom_call.1} parent=1 // pred_region
      %37 = dma.done [#allocation3], 128
    $region13: #{tpu_custom_call.1} parent=1 // pred_fallthru
      _
    // Predicated region
    $region14: #{tpu_custom_call.1} parent=1 // pred_check
      _
    $region15: #{tpu_custom_call.1} parent=1 // pred_check_branch
      %39 = sbr.rel (0) target = $region17
    $region16: #{tpu_custom_call.1} parent=1 // pred_region
      %41 = dma.done [#allocation6], 256
    $region17: #{tpu_custom_call.1} parent=1 // pred_fallthru
      _
    %v42 = vld [vmem:[#allocation2] sm:$0xff]
    %v43 = vld [vmem:[#allocation5] sm:$0x1]
    %vm44 = vcmp.eq.s32.totalorder %v42, 0
    %v45 = vperm.slane %v43, 0
    %v46 = vsel %vm44, %v45, 0.0
    %v47 = vld [vmem:[#allocation5 + $0x1] sm:$0x1]
    %vm48 = vcmp.eq.s32.totalorder %v42, 1
    %v49 = vperm.slane %v47, 0
    %v50 = vsel %vm48, %v49, %v46
    %v51 = vld [vmem:[#allocation5 + $0x2] sm:$0x1]
    %vm52 = vcmp.eq.s32.totalorder %v42, 2
    %v53 = vperm.slane %v51, 0
    %v54 = vsel %vm52, %v53, %v50
    %v55 = vld [vmem:[#allocation5 + $0x3] sm:$0x1]
    %vm56 = vcmp.eq.s32.totalorder %v42, 3
    %v57 = vperm.slane %v55, 0
    %v58 = vsel %vm56, %v57, %v54
    %v59 = vld [vmem:[#allocation5 + $0x4] sm:$0x1]
    %vm60 = vcmp.eq.s32.totalorder %v42, 4
    %v61 = vperm.slane %v59, 0
    %v62 = vsel %vm60, %v61, %v58
    %v63 = vld [vmem:[#allocation5 + $0x5] sm:$0x1]
    %vm64 = vcmp.eq.s32.totalorder %v42, 5
    %v65 = vperm.slane %v63, 0
    %v66 = vsel %vm64, %v65, %v62
    %v67 = vld [vmem:[#allocation5 + $0x6] sm:$0x1]
    %vm68 = vcmp.eq.s32.totalorder %v42, 6
    %v69 = vperm.slane %v67, 0
    %v70 = vsel %vm68, %v69, %v66
    %v71 = vld [vmem:[#allocation5 + $0x7] sm:$0x1]
    %vm72 = vcmp.eq.s32.totalorder %v42, 7
    %v73 = vperm.slane %v71, 0
    %v74 = vsel %vm72, %v73, %v70
    %v75 = vld [vmem:[#allocation5 + $0x8] sm:$0x1]
    %vm76 = vcmp.eq.s32.totalorder %v42, 8
    %v77 = vperm.slane %v75, 0
    %v78 = vsel %vm76, %v77, %v74
    %v79 = vld [vmem:[#allocation5 + $0x9] sm:$0x1]
    %vm80 = vcmp.eq.s32.totalorder %v42, 9
    %v81 = vperm.slane %v79, 0
    %v82 = vsel %vm80, %v81, %v78
    %83 = vst [vmem:[#allocation7] sm:$0xff] %v82
    // Predicated region
    $region18: #{tpu_custom_call.1} parent=1 // pred_check
      _
    $region19: #{tpu_custom_call.1} parent=1 // pred_check_branch
      %85 = sbr.rel (0) target = $region21
    $region20: #{tpu_custom_call.1} parent=1 // pred_region
      %87 = vsyncadd [#allocation4], 0
      %s89 = sshll.u32 [#allocation7], 4
      %s90 = int_to_ptr.vmem [resolvable:$true] %s89
      %s91 = sshll.u32 %s2, 4
      %s92 = int_to_ptr.hbm [resolvable:$true] %s91
      %94 = dma.vmem_to_hbm [thread:$0]  %s90, 128, %s92, [#allocation4]
    $region21: #{tpu_custom_call.1} parent=1 // pred_fallthru
      _
    // Predicated region
    $region22: #{tpu_custom_call.1} parent=1 // pred_check
      _
    $region23: #{tpu_custom_call.1} parent=1 // pred_check_branch
      %96 = sbr.rel (0) target = $region25
    $region24: #{tpu_custom_call.1} parent=1 // pred_region
      %98 = dma.done [#allocation4], 128
    $region25: #{tpu_custom_call.1} parent=1 // pred_fallthru
      _
    %99 = vsyncpa [#allocation3], 1
    %100 = vsyncpa [#allocation6], 1
    %101 = vsyncpa [#allocation4], 1

</llo_original>
